<compile_context>
chip_gen: v6e
topology: v6e:2x2x1
jax: 0.10.0
libtpu: 0.0.40
codegen_flags: <defaults>
</compile_context>

<pallas_src>
import functools

import jax
import jax.numpy as jnp
import numpy as np
from jax.experimental import pallas as pl
from jax.experimental.pallas import tpu as pltpu

LANES = 128                      # lane width of a vreg
_W_TILE_BYTES_CAP = 10 << 20     # keep a resident W tile at or under ~10 MiB


def _round_up(v, m):
    return ((v + m - 1) // m) * m


def _num_row_split():
    """2 on dual-TensorCore / megacore chips (grid axis is 'parallel'), else 1."""
    try:
        kind = jax.devices()[0].device_kind.lower()
    except Exception:
        return 1
    if "v7" in kind or "tpu7" in kind or "v4" in kind or "v5p" in kind:
        return 2
    return 1


# ----------------------------------- kernel ---------------------------------
def _stft_loss_kernel(f_ref, w_ref, out_ref, acc_ref):
    """One grid step: fused windowed DFT, power spectra, lin+log L1 partials."""
    k = pl.program_id(1)                 # row-tile axis
    j = pl.program_id(2)                 # W column-tile axis (frequency groups)

    @pl.when((k == 0) & (j == 0))
    def _init():
        acc_ref[...] = jnp.zeros_like(acc_ref)

    # Single fused matmul: rows [:TM] are frames of x, rows [TM:] of x_orig.
    s = jnp.dot(f_ref[...], w_ref[...], preferred_element_type=jnp.float32)

    tm = acc_ref.shape[0]
    ng = s.shape[1] // (2 * LANES)       # frequency groups in this W tile
    for g in range(ng):                  # unrolled; live set = a few (TM, 128)
        c = 2 * g * LANES
        rx = s[:tm, c:c + LANES]
        ix = s[:tm, c + LANES:c + 2 * LANES]
        ro = s[tm:, c:c + LANES]
        io = s[tm:, c + LANES:c + 2 * LANES]
        px = rx * rx + ix * ix           # amp(stft(x))
        po = ro * ro + io * io           # amp(stft(x_orig))
        # |log a - log b| == |log(a/b)|; the exact ratio keeps zero-padded
        # rows / columns contributing exactly 0 (approx reciprocal would not).
        acc_ref[...] += (jnp.abs(po - px)
                         + jnp.abs(jnp.log((po + 1e-4) / (px + 1e-4))))

    @pl.when((k == pl.num_programs(1) - 1) & (j == pl.num_programs(2) - 1))
    def _finalize():
        out_ref[...] = jnp.sum(acc_ref[...], axis=0,
                               keepdims=True).reshape(1, 1, LANES)


# --------------------------------- wrapper ----------------------------------
def _frame(x, n_fft, hop):
    """x: [B, L] -> frames [B, T, n_fft]  (torch.stft, center=False)."""
    B, L = x.shape
    T = (L - n_fft) // hop + 1
    if n_fft % hop == 0:
        # strided-reshape framing: slices + concat, no gather.
        k = n_fft // hop
        C = T + k - 1
        chunks = x[:, :C * hop].reshape(B, C, hop)
        frames = jnp.concatenate([chunks[:, j:j + T, :] for j in range(k)],
                                 axis=-1)
    else:
        idx = jnp.arange(T)[:, None] * hop + jnp.arange(n_fft)[None, :]
        frames = x[:, idx]
    return frames, T


@functools.lru_cache(maxsize=None)
def _dft_matrix(n_fft, n_groups):
    """One-sided DFT matrix with the Hann window folded in.

    Columns are interleaved per 128-lane frequency group:
        [cos_g0 (128) | sin_g0 (128) | cos_g1 | sin_g1 | ...]
    so any column tile of width g*256 splits cleanly into (real, imag) pairs.
    Frequencies beyond F = n_fft//2 + 1 are zero columns (contribute 0).
    """
    F = n_fft // 2 + 1
    window = np.hanning(n_fft).astype(np.float64)       # matches nn.ParameterList
    n = np.arange(n_fft)[:, None]
    f = np.arange(F)[None, :]
    ang = 2.0 * np.pi * n * f / n_fft
    wcos = np.zeros((n_fft, n_groups * LANES), np.float32)
    wsin = np.zeros((n_fft, n_groups * LANES), np.float32)
    wcos[:, :F] = (window[:, None] * np.cos(ang)).astype(np.float32)
    wsin[:, :F] = (-window[:, None] * np.sin(ang)).astype(np.float32)
    wc = wcos.reshape(n_fft, n_groups, LANES)
    ws = wsin.reshape(n_fft, n_groups, LANES)
    return np.stack([wc, ws], axis=2).reshape(n_fft, n_groups * 2 * LANES)


def _scale_loss(x, x_orig, scale, overlap, ncores,
                max_w_tile_bytes=_W_TILE_BYTES_CAP):
    """x, x_orig: [B, L] bf16.  Returns the per-scale (lin + log) loss."""
    n_fft = scale
    hop = int((1.0 - overlap) * scale)            # same expression as the module
    F = n_fft // 2 + 1

    frames_x, T = _frame(x, n_fft, hop)           # [B, T, n_fft] bf16
    frames_o, To = _frame(x_orig, n_fft, hop)
    assert T == To
    B = x.shape[0]
    R = B * T

    # ---- row tiling: fused [fx ; fo] rows -> (2*TM, n_fft) blocks -----------
    TM = min(256, _round_up(max(-(-R // ncores), 16), 16))
    R_pad = _round_up(R, ncores * TM)
    nt = R_pad // TM                              # row tiles over all cores
    KB = nt // ncores

    fx = frames_x.reshape(R, n_fft)
    fo = frames_o.reshape(R, n_fft)
    if R_pad != R:
        # zero frames -> zero power for both signals -> contribute exactly 0.
        fx = jnp.pad(fx, ((0, R_pad - R), (0, 0)))
        fo = jnp.pad(fo, ((0, R_pad - R), (0, 0)))
    f = jnp.concatenate(
        [fx.reshape(nt, TM, n_fft), fo.reshape(nt, TM, n_fft)], axis=1
    ).reshape(nt * 2 * TM, n_fft)                 # rows: [x-tile | xo-tile] ...

    # ---- W column tiling over 128-lane frequency groups ---------------------
    GT = -(-F // LANES)                           # real frequency groups
    group_bytes = n_fft * 2 * LANES * 2           # one (cos|sin) group, bf16
    g_cap = max(1, max_w_tile_bytes // group_bytes)
    if GT <= g_cap:
        g_tile = GT                               # whole W resident (JB == 1)
    else:
        best = (GT + g_cap, 1)                    # (padded groups, tile groups)
        for g in range(1, g_cap + 1):
            tot = -(-GT // g) * g
            if tot < best[0] or (tot == best[0] and g > best[1]):
                best = (tot, g)
        g_tile = best[1]
    GT_pad = -(-GT // g_tile) * g_tile
    f_pad = GT_pad * LANES
    TN = g_tile * 2 * LANES                       # W tile width (cos+sin)
    JB = GT_pad // g_tile

    w = jnp.asarray(_dft_matrix(n_fft, GT_pad), dtype=jnp.bfloat16)

    if JB == 1:
        # Grid-invariant W: single buffer (halves its VMEM footprint).
        w_spec = pl.BlockSpec((n_fft, TN), lambda p, k, j: (0, j),
                              pipeline_mode=pl.Buffered(1))
        w_bufs = 1
    else:
        w_spec = pl.BlockSpec((n_fft, TN), lambda p, k, j: (0, j))
        w_bufs = 2

    # ---- VMEM budget + cost estimate ----------------------------------------
    vmem_need = (w_bufs * n_fft * TN * 2            # W tile(s), bf16
                 + 2 * (2 * TM) * n_fft * 2         # double-buffered frame tiles
                 + (2 * TM) * TN * 4                # f32 matmul result staging
                 + TM * LANES * 4)                  # accumulator scratch
    vmem_limit = int(min(max(vmem_need + (8 << 20), 24 << 20), 48 << 20))

    cost = pl.CostEstimate(
        flops=int(2 * (2 * R_pad) * n_fft * (2 * f_pad)),
        transcendentals=int(R_pad * f_pad),
        bytes_accessed=int(f.size * 2
                           + w.size * 2 * (1 if JB == 1 else ncores * KB)
                           + ncores * LANES * 4),
    )

    out = pl.pallas_call(
        _stft_loss_kernel,
        out_shape=jax.ShapeDtypeStruct((ncores, 1, LANES), jnp.float32),
        grid_spec=pltpu.PrefetchScalarGridSpec(
            num_scalar_prefetch=0,
            grid=(ncores, KB, JB),
            in_specs=[
                pl.BlockSpec((2 * TM, n_fft), lambda p, k, j: (p * KB + k, 0)),
                w_spec,
            ],
            out_specs=pl.BlockSpec((1, 1, LANES), lambda p, k, j: (p, 0, 0)),
            scratch_shapes=[pltpu.VMEM((TM, LANES), jnp.float32)],
        ),
        compiler_params=pltpu.CompilerParams(
            dimension_semantics=("parallel", "arbitrary", "arbitrary"),
            vmem_limit_bytes=vmem_limit),
        cost_estimate=cost,
    )(f, w)

    # sum_batch mean_{F,T}|.|  ==  sum_{B,F,T}|.| / (F*T)   (padding added 0)
    return jnp.sum(out) / jnp.float32(F * T)


def msstft_loss(x, x_orig, scales, overlap=0.75,
                max_w_tile_bytes=_W_TILE_BYTES_CAP):
    """x: [B, Lx] float, x_orig: [B, 1, L] float -> scalar loss."""
    L = x_orig.shape[-1]
    x = x[:, :L]
    xo = x_orig[:, 0, :] if x_orig.ndim == 3 else x_orig
    # bf16 BEFORE framing: identical frame values, half the framing HBM traffic.
    xb = x.astype(jnp.bfloat16)
    xob = xo.astype(jnp.bfloat16)
    ncores = _num_row_split()
    total = jnp.float32(0.0)
    for scale in scales:
        total = total + _scale_loss(xb, xob, scale, overlap, ncores,
                                    max_w_tile_bytes=max_w_tile_bytes)
    return total


# ----------------------------- pure-JAX reference ---------------------------
def msstft_loss_ref(x, x_orig, scales, overlap=0.75):
    L = x_orig.shape[-1]
    x = x[:, :L].astype(jnp.float32)
    xo = (x_orig[:, 0, :] if x_orig.ndim == 3 else x_orig).astype(jnp.float32)
    total = jnp.float32(0.0)
    for scale in scales:
        hop = int((1.0 - overlap) * scale)
        window = jnp.asarray(np.hanning(scale), dtype=jnp.float32)

        def power(sig):
            _, Ls = sig.shape
            T = (Ls - scale) // hop + 1
            idx = jnp.arange(T)[:, None] * hop + jnp.arange(scale)[None, :]
            fr = sig[:, idx] * window
            spec = jnp.fft.rfft(fr, axis=-1)
            return jnp.abs(spec) ** 2                  # [B, T, F]

        px = power(x)
        po = power(xo)
        lin = jnp.sum(jnp.mean(jnp.abs(po - px), axis=(1, 2)))
        logd = jnp.sum(jnp.mean(
            jnp.abs(jnp.log(po + 1e-4) - jnp.log(px + 1e-4)), axis=(1, 2)))
        total = total + lin + logd
    return total


if __name__ == "__main__":
    key = jax.random.PRNGKey(0)
    k1, k2 = jax.random.split(key)
    B, L = 2, 256
    scales = [64, 128, 256]

    x = jax.random.normal(k1, (B, L + 32), dtype=jnp.float32)   # pre-truncation
    x_orig = jax.random.normal(k2, (B, 1, L), dtype=jnp.float32)

    out = jax.block_until_ready(msstft_loss(x, x_orig, scales, overlap=0.75))
    ref = jax.block_until_ready(msstft_loss_ref(x, x_orig, scales, overlap=0.75))
    assert np.isfinite(float(out))
    np.testing.assert_allclose(float(out), float(ref), rtol=5e-2)

    # Also exercise the column-tiled-W path (JB > 1, W double-buffered,
    # frames resident across the j axis) by forcing a tiny W tile cap.
    out_t = jax.block_until_ready(
        msstft_loss(x, x_orig, [256], overlap=0.75, max_w_tile_bytes=128 * 1024))
    ref_t = jax.block_until_ready(msstft_loss_ref(x, x_orig, [256], overlap=0.75))
    assert np.isfinite(float(out_t))
    np.testing.assert_allclose(float(out_t), float(ref_t), rtol=5e-2)

    print("KERNEL_OK")
</pallas_src>

<mosaic_0001>
module attributes {stable_mosaic.version = 11 : i64} {
  func.func @_stft_loss_kernel(%arg0: i32, %arg1: i32, %arg2: i32, %arg3: memref<64x64xbf16, #tpu.memory_space<vmem>>, %arg4: memref<64x256xbf16, #tpu.memory_space<vmem>>, %arg5: memref<1x1x128xf32, #tpu.memory_space<vmem>>, %arg6: memref<32x128xf32, #tpu.memory_space<vmem>>) attributes {dimension_semantics = [#tpu.dimension_semantics<parallel>, #tpu.dimension_semantics<arbitrary>, #tpu.dimension_semantics<arbitrary>], iteration_bounds = array<i64: 1, 1, 1>, scalar_prefetch = 0 : i64, scratch_operands = 1 : i64, tpu.core_type = #tpu.core_type<tc>, window_params = [{transform_indices = @transform_0, window_bounds = array<i64: 64, 64>}, {pipeline_mode = #tpu.pipeline_mode<synchronous>, transform_indices = @transform_1, window_bounds = array<i64: 64, 256>}, {transform_indices = @transform_2, window_bounds = array<i64: 1, 1, 128>}]} {
    %c0_i32 = arith.constant 0 : i32
    %0 = arith.cmpi eq, %arg1, %c0_i32 : i32
    %c0_i32_0 = arith.constant 0 : i32
    %1 = arith.cmpi eq, %arg2, %c0_i32_0 : i32
    %2 = arith.andi %0, %1 : i1
    %3 = arith.extui %2 : i1 to i32
    %c0_i32_1 = arith.constant 0 : i32
    %4 = arith.cmpi ne, %3, %c0_i32_1 : i32
    scf.if %4 {
      %cst_14 = arith.constant 0.000000e+00 : f32
      %36 = vector.broadcast %cst_14 : f32 to vector<32x128xf32>
      %c0_15 = arith.constant 0 : index
      %c0_16 = arith.constant 0 : index
      %37 = vector.load %arg6[%c0_15, %c0_16] : memref<32x128xf32, #tpu.memory_space<vmem>>, vector<32x128xf32>
      tpu.vector_store %arg6[%c0_15, %c0_16], %36 {strides = array<i32>} : memref<32x128xf32, #tpu.memory_space<vmem>>, vector<32x128xf32>,
    } else {
    }
    %c0 = arith.constant 0 : index
    %c0_2 = arith.constant 0 : index
    %5 = vector.load %arg3[%c0, %c0_2] : memref<64x64xbf16, #tpu.memory_space<vmem>>, vector<64x64xbf16>
    %c0_3 = arith.constant 0 : index
    %c0_4 = arith.constant 0 : index
    %6 = vector.load %arg4[%c0_3, %c0_4] : memref<64x256xbf16, #tpu.memory_space<vmem>>, vector<64x256xbf16>
    %cst = arith.constant dense<0.000000e+00> : vector<64x256xf32>
    %7 = tpu.matmul %5, %6, %cst {dimension_numbers = #tpu.dot_dimension_numbers<[1], [0], [0], [1], [0, 0, 1, 1], [], []>} : vector<64x64xbf16>, vector<64x256xbf16>, vector<64x256xf32> -> vector<64x256xf32>
    %8 = vector.extract_strided_slice %7 {offsets = [0, 0], sizes = [32, 128], strides = [1, 1]} : vector<64x256xf32> to vector<32x128xf32>
    %9 = vector.extract_strided_slice %7 {offsets = [0, 128], sizes = [32, 128], strides = [1, 1]} : vector<64x256xf32> to vector<32x128xf32>
    %10 = vector.extract_strided_slice %7 {offsets = [32, 0], sizes = [32, 128], strides = [1, 1]} : vector<64x256xf32> to vector<32x128xf32>
    %11 = vector.extract_strided_slice %7 {offsets = [32, 128], sizes = [32, 128], strides = [1, 1]} : vector<64x256xf32> to vector<32x128xf32>
    %12 = arith.mulf %8, %8 : vector<32x128xf32>
    %13 = arith.mulf %9, %9 : vector<32x128xf32>
    %14 = arith.addf %12, %13 : vector<32x128xf32>
    %15 = arith.mulf %10, %10 : vector<32x128xf32>
    %16 = arith.mulf %11, %11 : vector<32x128xf32>
    %17 = arith.addf %15, %16 : vector<32x128xf32>
    %c0_5 = arith.constant 0 : index
    %c0_6 = arith.constant 0 : index
    %18 = vector.load %arg6[%c0_5, %c0_6] : memref<32x128xf32, #tpu.memory_space<vmem>>, vector<32x128xf32>
    %19 = arith.subf %17, %14 : vector<32x128xf32>
    %20 = math.absf %19 : vector<32x128xf32>
    %cst_7 = arith.constant 9.99999974E-5 : f32
    %21 = vector.broadcast %cst_7 : f32 to vector<32x128xf32>
    %22 = arith.addf %17, %21 : vector<32x128xf32>
    %cst_8 = arith.constant 9.99999974E-5 : f32
    %23 = vector.broadcast %cst_8 : f32 to vector<32x128xf32>
    %24 = arith.addf %14, %23 : vector<32x128xf32>
    %25 = arith.divf %22, %24 : vector<32x128xf32>
    %26 = math.log %25 : vector<32x128xf32>
    %27 = math.absf %26 : vector<32x128xf32>
    %28 = arith.addf %20, %27 : vector<32x128xf32>
    %29 = arith.addf %18, %28 : vector<32x128xf32>
    %c0_9 = arith.constant 0 : index
    %c0_10 = arith.constant 0 : index
    %30 = vector.load %arg6[%c0_9, %c0_10] : memref<32x128xf32, #tpu.memory_space<vmem>>, vector<32x128xf32>
    tpu.vector_store %arg6[%c0_9, %c0_10], %29 {strides = array<i32>} : memref<32x128xf32, #tpu.memory_space<vmem>>, vector<32x128xf32>,
    %c0_i32_11 = arith.constant 0 : i32
    %31 = arith.cmpi eq, %arg1, %c0_i32_11 : i32
    %c0_i32_12 = arith.constant 0 : i32
    %32 = arith.cmpi eq, %arg2, %c0_i32_12 : i32
    %33 = arith.andi %31, %32 : i1
    %34 = arith.extui %33 : i1 to i32
    %c0_i32_13 = arith.constant 0 : i32
    %35 = arith.cmpi ne, %34, %c0_i32_13 : i32
    scf.if %35 {
      %c0_14 = arith.constant 0 : index
      %c0_15 = arith.constant 0 : index
      %36 = vector.load %arg6[%c0_14, %c0_15] : memref<32x128xf32, #tpu.memory_space<vmem>>, vector<32x128xf32>
      %cst_16 = arith.constant dense<0.000000e+00> : vector<128xf32>
      %37 = vector.multi_reduction <add>, %36, %cst_16 [0] : vector<32x128xf32> to vector<128xf32>
      %38 = vector.shape_cast %37 : vector<128xf32> to vector<1x128xf32>
      %39 = vector.shape_cast %38 : vector<1x128xf32> to vector<1x1x128xf32>
      %c0_17 = arith.constant 0 : index
      %c0_18 = arith.constant 0 : index
      %c0_19 = arith.constant 0 : index
      %40 = vector.load %arg5[%c0_17, %c0_18, %c0_19] : memref<1x1x128xf32, #tpu.memory_space<vmem>>, vector<1x1x128xf32>
      tpu.vector_store %arg5[%c0_17, %c0_18, %c0_19], %39 {strides = array<i32>} : memref<1x1x128xf32, #tpu.memory_space<vmem>>, vector<1x1x128xf32>,
    } else {
    }
    return
  }
  func.func @transform_0(%arg0: i32, %arg1: i32, %arg2: i32) -> (i32, i32) {
    %c1_i32 = arith.constant 1 : i32
    %0 = arith.muli %arg0, %c1_i32 : i32
    %1 = arith.addi %0, %arg1 : i32
    %c0_i32 = arith.constant 0 : i32
    %c0_i32_0 = arith.constant 0 : i32
    return %1, %c0_i32 : i32, i32
  }
  func.func @transform_1(%arg0: i32, %arg1: i32, %arg2: i32) -> (i32, i32) {
    %c0_i32 = arith.constant 0 : i32
    %c0_i32_0 = arith.constant 0 : i32
    return %c0_i32, %arg2 : i32, i32
  }
  func.func @transform_2(%arg0: i32, %arg1: i32, %arg2: i32) -> (i32, i32, i32) {
    %c0_i32 = arith.constant 0 : i32
    %c0_i32_0 = arith.constant 0 : i32
    %c0_i32_1 = arith.constant 0 : i32
    return %arg0, %c0_i32, %c0_i32_0 : i32, i32, i32
  }
}

</mosaic_0001>

<llo_original>
// kernel: tpu_custom_call.1
$region0: #{tpu_custom_call.1}
  #allocation0 [shape = 'u32[]', space=smem, size = 0x4, offset = 0x4, fixed_abs, tag = 'smem constant byte address 0x4 - core index']
  #allocation1 [shape = 'u32[144,128]{1,0:T(1,128)}', space=vmem, size = 0x12000, scoped, tag = 'internal scratch']
  #allocation2 [shape = 'f32[32,128]{1,0:T(8,128)}', space=vmem, size = 0x4000, scoped, tag = 'scratch operand']
  %s0 = inlined_call_operand.hbm [shape: bf16[64,64], index: 0, kind: input, shape index: {}]
  %s1 = inlined_call_operand.hbm [shape: bf16[64,256], index: 1, kind: input, shape index: {}]
  %s2 = inlined_call_operand.hbm [shape: f32[1,1,128], index: 2, kind: output, shape index: {}]
  %s3 = sld [smem:[#allocation0]]
  $region34: #{tpu_custom_call.1} parent=0
    _
  %s5 = ssub.s32 1, %s3
  %s6 = scalar_select 0, %s5, %s3
  $region1: #{tpu_custom_call.1} parent=0
    #allocation3 [shape = 'u8[16384]{0}', space=vmem, size = 0x4000, scoped, tag = 'input window, operand 0, single buffered']
    #allocation4 [shape = 's32[1]{0}', space=sflag, size = 0x4, scoped, tag = 'scoped memory for tpu_custom_call.1']
    #allocation5 [shape = 's32[1]{0}', space=sflag, size = 0x4, scoped, tag = 'scoped memory for tpu_custom_call.1']
    #allocation6 [shape = 'u8[32768]{0}', space=vmem, size = 0x8000, scoped, tag = 'input window, operand 1, single buffered']
    #allocation7 [shape = 's32[1]{0}', space=sflag, size = 0x4, scoped, tag = 'scoped memory for tpu_custom_call.1']
    #allocation8 [shape = 'u8[512]{0}', space=vmem, size = 0x400, scoped, tag = 'output window, operand 0, single buffered']
    %7 = vsyncpa [#allocation4], 0
    %8 = vsyncpa [#allocation7], 0
    %9 = vsyncpa [#allocation5], 0
    // Predicated region
    $region2: #{tpu_custom_call.1} parent=1 // pred_check
      _
    $region3: #{tpu_custom_call.1} parent=1 // pred_check_branch
      %11 = sbr.rel (0) target = $region5
    $region4: #{tpu_custom_call.1} parent=1 // pred_region
      %s12 = sadd.s32 0, 0
      %s13 = smul.u32 8, %s12
      %s15 = ssub.s32 512, 512
      %16 = vsyncadd [#allocation4], %s15
      %s17 = smul.addr %s13, 64
      %s18 = scalar_lea.hbm %s0, %s17
      %s19 = sshll.u32 [#allocation3], 4
      %s20 = int_to_ptr.vmem [resolvable:$true] %s19
      %25 = dma.hbm_to_vmem [thread:$0]  %s18, 512, %s20, [#allocation4], 64, 64, 4
    $region5: #{tpu_custom_call.1} parent=1 // pred_fallthru
      _
    // Predicated region
    $region6: #{tpu_custom_call.1} parent=1 // pred_check
      _
    $region7: #{tpu_custom_call.1} parent=1 // pred_check_branch
      %27 = sbr.rel (0) target = $region9
    $region8: #{tpu_custom_call.1} parent=1 // pred_region
      %s29 = ssub.s32 1024, 1024
      %30 = vsyncadd [#allocation7], %s29
      %s31 = sshll.u32 [#allocation6], 4
      %s32 = int_to_ptr.vmem [resolvable:$true] %s31
      %37 = dma.hbm_to_vmem [thread:$0]  %s1, 1024, %s32, [#allocation7], 128, 128, 8
    $region9: #{tpu_custom_call.1} parent=1 // pred_fallthru
      _
    // Predicated region
    $region10: #{tpu_custom_call.1} parent=1 // pred_check
      _
    $region11: #{tpu_custom_call.1} parent=1 // pred_check_branch
      %39 = sbr.rel (0) target = $region13
    $region12: #{tpu_custom_call.1} parent=1 // pred_region
      %40 = dma.done [#allocation4], 512
    $region13: #{tpu_custom_call.1} parent=1 // pred_fallthru
      _
    // Predicated region
    $region14: #{tpu_custom_call.1} parent=1 // pred_check
      _
    $region15: #{tpu_custom_call.1} parent=1 // pred_check_branch
      %42 = sbr.rel (0) target = $region17
    $region16: #{tpu_custom_call.1} parent=1 // pred_region
      %43 = dma.done [#allocation7], 1024
    $region17: #{tpu_custom_call.1} parent=1 // pred_fallthru
      _
    %s44 = sadd.s32 0, 0
    %s45 = smul.u32 8, %s44
    %p47 = scmp.eq.s32.totalorder 0, 0
    %p48 = scmp.eq.s32.totalorder 0, 0
    %p49 = pnand %p47, %p48
    %p50 = pneg %p49
    // Predicated region
    $region18: #{tpu_custom_call.1} parent=1 // pred_check
      _
    $region19: #{tpu_custom_call.1} parent=1 // pred_check_branch
      %52 = sbr.rel (%p49) target = $region21
    $region20: #{tpu_custom_call.1} parent=1 // pred_region
      %53 = vst [vmem:[#allocation2] sm:$0xff] 0.0
      %54 = vst [vmem:[#allocation2 + $0x8] sm:$0xff] 0.0
      %55 = vst [vmem:[#allocation2 + $0x10] sm:$0xff] 0.0
      %56 = vst [vmem:[#allocation2 + $0x18] sm:$0xff] 0.0
    $region21: #{tpu_custom_call.1} parent=1 // pred_fallthru
      _
    %v57 = vld [vmem:[#allocation3] sm:$0xf]
    %v58 = vld [vmem:[#allocation3 + $0x4] sm:$0xf]
    %v59 = vld [vmem:[#allocation3 + $0x8] sm:$0xf]
    %v60 = vld [vmem:[#allocation3 + $0xc] sm:$0xf]
    %v61 = vld [vmem:[#allocation3 + $0x10] sm:$0xf]
    %v62 = vld [vmem:[#allocation3 + $0x14] sm:$0xf]
    %v63 = vld [vmem:[#allocation3 + $0x18] sm:$0xf]
    %v64 = vld [vmem:[#allocation3 + $0x1c] sm:$0xf]
    %v65 = vld [vmem:[#allocation6] sm:$0xff]
    %v66 = vld [vmem:[#allocation6 + $0x8] sm:$0xff]
    %v67 = vld [vmem:[#allocation6 + $0x10] sm:$0xff]
    %v68 = vld [vmem:[#allocation6 + $0x18] sm:$0xff]
    %v69 = vld [vmem:[#allocation6 + $0x20] sm:$0xff]
    %v70 = vld [vmem:[#allocation6 + $0x28] sm:$0xff]
    %v71 = vld [vmem:[#allocation6 + $0x30] sm:$0xff]
    %v72 = vld [vmem:[#allocation6 + $0x38] sm:$0xff]
    %v81 = vunpack.c.l.b16 %v57
    %v82 = vunpack.c.l.b16 %v58
    %v83 = vunpack.c.l.b16 %v59
    %v84 = vunpack.c.l.b16 %v60
    %v85 = vunpack.c.l.b16 %v61
    %v86 = vunpack.c.l.b16 %v62
    %v87 = vunpack.c.l.b16 %v63
    %v88 = vunpack.c.l.b16 %v64
    %v89 = vpack.c.b16 %v82, %v81
    %v90 = vpack.c.b16 %v84, %v83
    %v91 = vpack.c.b16 %v86, %v85
    %v92 = vpack.c.b16 %v88, %v87
    %v101 = vunpack.c.l.b16 %v65
    %v102 = vunpack.c.h.b16 %v65
    %v103 = vunpack.c.l.b16 %v66
    %v104 = vunpack.c.h.b16 %v66
    %v105 = vunpack.c.l.b16 %v67
    %v106 = vunpack.c.h.b16 %v67
    %v107 = vunpack.c.l.b16 %v68
    %v108 = vunpack.c.h.b16 %v68
    %v109 = vunpack.c.l.b16 %v69
    %v110 = vunpack.c.h.b16 %v69
    %v111 = vunpack.c.l.b16 %v70
    %v112 = vunpack.c.h.b16 %v70
    %v113 = vunpack.c.l.b16 %v71
    %v114 = vunpack.c.h.b16 %v71
    %v115 = vunpack.c.l.b16 %v72
    %v116 = vunpack.c.h.b16 %v72
    %v117 = vpack.c.b16 %v103, %v101
    %v118 = vpack.c.b16 %v104, %v102
    %v119 = vpack.c.b16 %v107, %v105
    %v120 = vpack.c.b16 %v108, %v106
    %v121 = vpack.c.b16 %v111, %v109
    %v122 = vpack.c.b16 %v112, %v110
    %v123 = vpack.c.b16 %v115, %v113
    %v124 = vpack.c.b16 %v116, %v114
    %vm133 = vcmask 523264
    %v135 = vsel %vm133, %v89, 0
    %v138 = vsel %vm133, %v90, 0
    %v141 = vsel %vm133, %v91, 0
    %v144 = vsel %vm133, %v92, 0
    %146 = vmatprep.subr.bf16.mxu0 0
    %147 = vmatpush1.bf16.msra.mxu0 0
    %148 = vmatprep.subr.bf16.mxu0 0
    %149 = vmatpush1.bf16.msra.mxu0 0
    %150 = vmatprep.subr.bf16.mxu0 0
    %151 = vmatpush1.bf16.msra.mxu0 0
    %152 = vmatprep.subr.bf16.mxu0 0
    %153 = vmatpush1.bf16.msra.mxu0 0
    %154 = vmatprep.subr.bf16.mxu0 %v124
    %155 = vmatpush1.bf16.msra.mxu0 %v123
    %156 = vmatprep.subr.bf16.mxu0 %v122
    %157 = vmatpush1.bf16.msra.mxu0 %v121
    %158 = vmatprep.subr.bf16.mxu0 %v120
    %159 = vmatpush1.bf16.msra.mxu0 %v119
    %160 = vmatprep.subr.bf16.mxu0 %v118
    %161 = vmatpush1.bf16.msra.mxu0 %v117
    %162 = vmatprep.subr.bf16.mxu0 0
    %163 = vmatpush2.bf16.msra.mxu0 0
    %164 = vmatprep.subr.bf16.mxu0 0
    %165 = vmatpush2.bf16.msra.mxu0 0
    %166 = vmatprep.subr.bf16.mxu0 0
    %167 = vmatpush2.bf16.msra.mxu0 0
    %168 = vmatprep.subr.bf16.mxu0 0
    %169 = vmatpush2.bf16.msra.mxu0 0
    %170 = vmatprep.subr.bf16.mxu0 0
    %171 = vmatpush2.bf16.msra.mxu0 0
    %172 = vmatprep.subr.bf16.mxu0 0
    %173 = vmatpush2.bf16.msra.mxu0 0
    %174 = vmatprep.subr.bf16.mxu0 0
    %175 = vmatpush2.bf16.msra.mxu0 0
    %176 = vmatprep.subr.bf16.mxu0 0
    %177 = vmatpush2.bf16.msra.mxu0 0
    %178 = vmatprep.mubr.bf16.mxu0 0
    %179 = vmatmul.mubr.bf16.gmra.mxu0 %v135
    %v180 = vpop.f32.mrf.mxu0
    %v181 = vadd.f32 0.0, %v180
    %v182 = vpop.f32.mrf.mxu0
    %v183 = vadd.f32 0.0, %v182
    %v184 = vpop.f32.mrf.mxu0
    %v185 = vadd.f32 0.0, %v184
    %v186 = vpop.f32.mrf.mxu0
    %v187 = vadd.f32 0.0, %v186
    %188 = vmatprep.mubr.bf16.mxu0 0
    %189 = vmatmul.mubr.bf16.gmra.mxu0 %v138
    %v190 = vpop.f32.mrf.mxu0
    %v191 = vadd.f32 0.0, %v190
    %v192 = vpop.f32.mrf.mxu0
    %v193 = vadd.f32 0.0, %v192
    %v194 = vpop.f32.mrf.mxu0
    %v195 = vadd.f32 0.0, %v194
    %v196 = vpop.f32.mrf.mxu0
    %v197 = vadd.f32 0.0, %v196
    %198 = vmatprep.mubr.bf16.mxu0 0
    %199 = vmatmul.mubr.bf16.gmra.mxu0 %v141
    %v200 = vpop.f32.mrf.mxu0
    %v201 = vadd.f32 0.0, %v200
    %v202 = vpop.f32.mrf.mxu0
    %v203 = vadd.f32 0.0, %v202
    %v204 = vpop.f32.mrf.mxu0
    %v205 = vadd.f32 0.0, %v204
    %v206 = vpop.f32.mrf.mxu0
    %v207 = vadd.f32 0.0, %v206
    %208 = vmatprep.mubr.bf16.mxu0 0
    %209 = vmatmul.mubr.bf16.gmra.mxu0 %v144
    %v210 = vpop.f32.mrf.mxu0
    %v211 = vadd.f32 0.0, %v210
    %v212 = vpop.f32.mrf.mxu0
    %v213 = vadd.f32 0.0, %v212
    %v214 = vpop.f32.mrf.mxu0
    %v215 = vadd.f32 0.0, %v214
    %v216 = vpop.f32.mrf.mxu0
    %v217 = vadd.f32 0.0, %v216
    %218 = vdwg.mxu0
    %v219 = vmul.f32 %v181, %v181
    %v220 = vmul.f32 %v185, %v185
    %v221 = vmul.f32 %v191, %v191
    %v222 = vmul.f32 %v195, %v195
    %v223 = vmul.f32 %v183, %v183
    %v224 = vmul.f32 %v187, %v187
    %v225 = vmul.f32 %v193, %v193
    %v226 = vmul.f32 %v197, %v197
    %v227 = vadd.f32 %v219, %v223
    %v228 = vadd.f32 %v220, %v224
    %v229 = vadd.f32 %v221, %v225
    %v230 = vadd.f32 %v222, %v226
    %v231 = vmul.f32 %v201, %v201
    %v232 = vmul.f32 %v205, %v205
    %v233 = vmul.f32 %v211, %v211
    %v234 = vmul.f32 %v215, %v215
    %v235 = vmul.f32 %v203, %v203
    %v236 = vmul.f32 %v207, %v207
    %v237 = vmul.f32 %v213, %v213
    %v238 = vmul.f32 %v217, %v217
    %v239 = vadd.f32 %v231, %v235
    %v240 = vadd.f32 %v232, %v236
    %v241 = vadd.f32 %v233, %v237
    %v242 = vadd.f32 %v234, %v238
    %v243 = vld [vmem:[#allocation2] sm:$0xff]
    %v244 = vld [vmem:[#allocation2 + $0x8] sm:$0xff]
    %v245 = vld [vmem:[#allocation2 + $0x10] sm:$0xff]
    %v246 = vld [vmem:[#allocation2 + $0x18] sm:$0xff]
    %v247 = vsub.f32 %v239, %v227
    %v248 = vsub.f32 %v240, %v228
    %v249 = vsub.f32 %v241, %v229
    %v250 = vsub.f32 %v242, %v230
    %v251 = vand.u32 2147483647, %v247
    %v252 = vand.u32 2147483647, %v248
    %v253 = vand.u32 2147483647, %v249
    %v254 = vand.u32 2147483647, %v250
    %v255 = vadd.f32 %v239, 0.0001
    %v256 = vadd.f32 %v240, 0.0001
    %v257 = vadd.f32 %v241, 0.0001
    %v258 = vadd.f32 %v242, 0.0001
    %v259 = vadd.f32 %v227, 0.0001
    %v260 = vadd.f32 %v228, 0.0001
    %v261 = vadd.f32 %v229, 0.0001
    %v262 = vadd.f32 %v230, 0.0001
    %v263 = vrcp.pop %v259
    %v264 = vmul.f32 %v255, %v263
    %v265 = vrcp.pop %v260
    %v266 = vmul.f32 %v256, %v265
    %v267 = vrcp.pop %v261
    %v268 = vmul.f32 %v257, %v267
    %v269 = vrcp.pop %v262
    %v270 = vmul.f32 %v258, %v269
    %v271 = vlog2.pop %v264
    %v272 = vmul.f32 %v271, 0.6931472
    %v273 = vlog2.pop %v266
    %v274 = vmul.f32 %v273, 0.6931472
    %v275 = vlog2.pop %v268
    %v276 = vmul.f32 %v275, 0.6931472
    %v277 = vlog2.pop %v270
    %v278 = vmul.f32 %v277, 0.6931472
    %v279 = vand.u32 2147483647, %v272
    %v280 = vand.u32 2147483647, %v274
    %v281 = vand.u32 2147483647, %v276
    %v282 = vand.u32 2147483647, %v278
    %v283 = vadd.f32 %v251, %v279
    %v284 = vadd.f32 %v252, %v280
    %v285 = vadd.f32 %v253, %v281
    %v286 = vadd.f32 %v254, %v282
    %v287 = vadd.f32 %v243, %v283
    %v288 = vadd.f32 %v244, %v284
    %v289 = vadd.f32 %v245, %v285
    %v290 = vadd.f32 %v246, %v286
    %291 = vst [vmem:[#allocation2] sm:$0xff] %v287
    %292 = vst [vmem:[#allocation2 + $0x8] sm:$0xff] %v288
    %293 = vst [vmem:[#allocation2 + $0x10] sm:$0xff] %v289
    %294 = vst [vmem:[#allocation2 + $0x18] sm:$0xff] %v290
    // Predicated region
    $region22: #{tpu_custom_call.1} parent=1 // pred_check
      _
    $region23: #{tpu_custom_call.1} parent=1 // pred_check_branch
      %296 = sbr.rel (%p49) target = $region25
    $region24: #{tpu_custom_call.1} parent=1 // pred_region
      %v297 = vld [vmem:[#allocation2] sm:$0xff]
      %v298 = vld [vmem:[#allocation2 + $0x8] sm:$0xff]
      %v299 = vld [vmem:[#allocation2 + $0x10] sm:$0xff]
      %v300 = vld [vmem:[#allocation2 + $0x18] sm:$0xff]
      %v301 = vadd.f32 %v297, %v298
      %v302 = vadd.f32 %v301, %v299
      %v303 = vadd.f32 %v302, %v300
      %v304 = vrot.slane %v303, 4
      %v305 = vadd.f32 %v303, %v304
      %v306 = vrot.slane %v305, 2
      %v307 = vadd.f32 %v305, %v306
      %v308 = vrot.slane %v307, 1
      %v309 = vadd.f32 %v307, %v308
      %310 = vst [vmem:[#allocation8] sm:$0x1] %v309
    $region25: #{tpu_custom_call.1} parent=1 // pred_fallthru
      _
    // Predicated region
    $region26: #{tpu_custom_call.1} parent=1 // pred_check
      _
    $region27: #{tpu_custom_call.1} parent=1 // pred_check_branch
      %312 = sbr.rel (0) target = $region29
    $region28: #{tpu_custom_call.1} parent=1 // pred_region
      %s314 = ssub.s32 16, 16
      %315 = vsyncadd [#allocation5], %s314
      %s317 = sshll.u32 [#allocation8], 4
      %s318 = int_to_ptr.vmem [resolvable:$true] %s317
      %320 = dma.vmem_to_hbm [thread:$0]  %s318, 16, %s2, [#allocation5]
    $region29: #{tpu_custom_call.1} parent=1 // pred_fallthru
      _
    // Predicated region
    $region30: #{tpu_custom_call.1} parent=1 // pred_check
      _
    $region31: #{tpu_custom_call.1} parent=1 // pred_check_branch
      %322 = sbr.rel (0) target = $region33
    $region32: #{tpu_custom_call.1} parent=1 // pred_region
      %323 = dma.done [#allocation5], 16
    $region33: #{tpu_custom_call.1} parent=1 // pred_fallthru
      _
    %324 = vsyncpa [#allocation4], 1
    %325 = vsyncpa [#allocation7], 1
    %326 = vsyncpa [#allocation5], 1

</llo_original>
